<compile_context>
chip_gen: v7x
topology: tpu7x:2x2x1
jax: 0.10.0
libtpu: 0.0.40
codegen_flags: <defaults>
</compile_context>

<pallas_src>
import functools

import jax
import jax.numpy as jnp
from jax.experimental import pallas as pl
from jax.experimental.pallas import tpu as pltpu

LANE = 128
SUB = 8
CHUNK_ROWS = 256          # sub-chunk height for in-kernel accumulation


def _default_block_rows():
    """Per-generation default block height (rows of 128 lanes)."""
    try:
        kind = jax.devices()[0].device_kind.lower()
    except Exception:  # pragma: no cover - defensive
        return 4096
    # v6e / v7x: 32 MiB default scoped VMEM -> 8192-row blocks (20 MiB dbuf).
    if ("v6" in kind) or ("6e" in kind) or ("v7" in kind) or ("7x" in kind):
        return 8192
    # v5e (16 MiB default scoped VMEM) and anything unknown: 4096 rows.
    return 4096


def _pick_chunk_rows(block_rows):
    for c in (CHUNK_ROWS, 128, 64):
        if block_rows % c == 0:
            return c
    return block_rows  # small / irregular block: single chunk


def ips_loss_kernel(out_ref, lab_ref, w_ref, part_ref, *,
                    total_rows, block_rows, chunk_rows):
    """One grid step: weighted squared error over a (block_rows, 128) tile,
    accumulated chunk-by-chunk into an (8, 128) per-lane partial-sum block."""
    num_chunks = block_rows // chunk_rows
    groups = chunk_rows // SUB
    needs_mask = (total_rows % block_rows) != 0

    block_row0 = pl.program_id(0) * block_rows
    if needs_mask:
        # Hoisted once per grid step; per-chunk offset is a scalar add.
        base_rows = jax.lax.broadcasted_iota(jnp.int32, (chunk_rows, LANE), 0)

    def chunk_sum(start):
        o = out_ref[pl.ds(start, chunk_rows), :]
        l = lab_ref[pl.ds(start, chunk_rows), :].astype(jnp.float32)
        w = w_ref[pl.ds(start, chunk_rows), :]
        diff = o - l
        contrib = diff * diff * w
        if needs_mask:
            # Last grid block hangs past the array; its OOB rows hold
            # unspecified data -> zero them BEFORE any accumulation.
            row_ids = (block_row0 + start) + base_rows
            contrib = jnp.where(row_ids < total_rows, contrib,
                                jnp.float32(0.0))
        # Tile-aligned reshape (groups of 8 sublanes) + leading-axis sum:
        # pure VPU adds, per-lane partials preserved.
        return jnp.sum(contrib.reshape(groups, SUB, LANE), axis=0)

    if num_chunks == 1:
        part_ref[...] = chunk_sum(0)
    else:
        def body(c, acc):
            start = pl.multiple_of(c * chunk_rows, chunk_rows)
            return acc + chunk_sum(start)

        part_ref[...] = jax.lax.fori_loop(
            0, num_chunks, body, jnp.zeros((SUB, LANE), jnp.float32))


@functools.partial(jax.jit, static_argnames=("max_block_rows",))
def ips_loss(output, label, inverse_propensity, item, *, max_block_rows=None):
    """output: (N,) float, label: (N,) float (integer-valued classes),
    inverse_propensity: (num_items, num_classes) float, item: (N,) int."""
    # Glue: per-sample weight gather (matches torch's python map / int(label)).
    weight = inverse_propensity[item.astype(jnp.int32), label.astype(jnp.int32)]

    n = output.shape[0]
    pad_to = SUB * LANE                       # 1024: keeps rows a multiple of 8
    padded = pl.cdiv(n, pad_to) * pad_to
    rows = padded // LANE                     # multiple of 8

    if max_block_rows is None:
        max_block_rows = _default_block_rows()
    br = min(max_block_rows, rows)            # block rows (mult of 8, or ==rows)
    chunk = _pick_chunk_rows(br)
    grid = (pl.cdiv(rows, br),)

    def prep(x, dtype):
        x = x.astype(dtype)
        if padded != n:                       # pad only when actually needed
            x = jnp.pad(x, (0, padded - n))   # zero pad -> zero contribution
        return x.reshape(rows, LANE)

    o2 = prep(output, jnp.float32)
    # Labels are small integers -> bf16 is exact; halves this HBM stream.
    l2 = prep(label, jnp.bfloat16)
    w2 = prep(weight, jnp.float32)

    kernel = functools.partial(
        ips_loss_kernel, total_rows=rows, block_rows=br, chunk_rows=chunk)

    n_elems = rows * LANE
    cost = pl.CostEstimate(
        flops=4 * n_elems,
        transcendentals=0,
        bytes_accessed=n_elems * (4 + 2 + 4) + grid[0] * SUB * LANE * 4,
    )

    partials = pl.pallas_call(
        kernel,
        out_shape=jax.ShapeDtypeStruct((grid[0] * SUB, LANE), jnp.float32),
        grid_spec=pltpu.PrefetchScalarGridSpec(
            num_scalar_prefetch=0,
            grid=grid,
            in_specs=[
                pl.BlockSpec((br, LANE), lambda i: (i, 0)),
                pl.BlockSpec((br, LANE), lambda i: (i, 0)),
                pl.BlockSpec((br, LANE), lambda i: (i, 0)),
            ],
            out_specs=pl.BlockSpec((SUB, LANE), lambda i: (i, 0)),
        ),
        compiler_params=pltpu.CompilerParams(
            # Each grid step writes its own output block -> safe to shard
            # across TensorCores (v7x megacore / 2 TCs).
            dimension_semantics=("parallel",),
        ),
        cost_estimate=cost,
    )(o2, l2, w2)

    # Tiny epilogue reduce over (grid*8, 128) per-lane partials.
    return jnp.sum(partials)


def _reference(output, label, inverse_propensity, item):
    w = inverse_propensity[item.astype(jnp.int32), label.astype(jnp.int32)]
    return jnp.sum((output - label) ** 2 * w)


if __name__ == "__main__":
    key = jax.random.PRNGKey(0)
    k1, k2, k3, k4 = jax.random.split(key, 4)

    NUM_ITEMS = 20     # rows of the inverse-propensity table
    NUM_CLASSES = 2    # label values (int(label) indexes columns)

    inverse_propensity = jax.random.uniform(
        k4, (NUM_ITEMS, NUM_CLASSES), dtype=jnp.float32, minval=0.5, maxval=5.0)

    # --- test 1: small single-block path (rows=8, no mask, no chunk loop) ---
    N = 300
    output = jax.random.uniform(k1, (N,), dtype=jnp.float32)
    label = jax.random.randint(k2, (N,), 0, NUM_CLASSES).astype(jnp.float32)
    item = jax.random.randint(k3, (N,), 0, NUM_ITEMS, dtype=jnp.int32)

    loss = jax.block_until_ready(ips_loss(output, label, inverse_propensity, item))
    ref = _reference(output, label, inverse_propensity, item)
    assert jnp.allclose(loss, ref, rtol=1e-5, atol=1e-5), (loss, ref)

    # --- test 2: multi-block grid + ragged-tail masking path ---
    N2 = 5000  # rows=40 with max_block_rows=16 -> grid=3, last block partial
    kk1, kk2, kk3 = jax.random.split(k1, 3)
    output2 = jax.random.uniform(kk1, (N2,), dtype=jnp.float32)
    label2 = jax.random.randint(kk2, (N2,), 0, NUM_CLASSES).astype(jnp.float32)
    item2 = jax.random.randint(kk3, (N2,), 0, NUM_ITEMS, dtype=jnp.int32)

    loss2 = jax.block_until_ready(
        ips_loss(output2, label2, inverse_propensity, item2, max_block_rows=16))
    ref2 = _reference(output2, label2, inverse_propensity, item2)
    assert jnp.allclose(loss2, ref2, rtol=1e-5, atol=1e-5), (loss2, ref2)

    # --- test 3: chunked fori_loop accumulation + ragged grid + mask ---
    N3 = 66000  # rows=520, max_block_rows=512 -> grid=2, 2 chunks/block, mask
    kkk1, kkk2, kkk3 = jax.random.split(k2, 3)
    output3 = jax.random.uniform(kkk1, (N3,), dtype=jnp.float32)
    label3 = jax.random.randint(kkk2, (N3,), 0, NUM_CLASSES).astype(jnp.float32)
    item3 = jax.random.randint(kkk3, (N3,), 0, NUM_ITEMS, dtype=jnp.int32)

    loss3 = jax.block_until_ready(
        ips_loss(output3, label3, inverse_propensity, item3, max_block_rows=512))
    ref3 = _reference(output3, label3, inverse_propensity, item3)
    assert jnp.allclose(loss3, ref3, rtol=1e-4, atol=1e-3), (loss3, ref3)

    print("KERNEL_OK")
</pallas_src>

<mosaic_0001>
module attributes {stable_mosaic.version = 11 : i64} {
  func.func @ips_loss_kernel(%arg0: i32, %arg1: memref<8x128xf32, #tpu.memory_space<vmem>>, %arg2: memref<8x128xbf16, #tpu.memory_space<vmem>>, %arg3: memref<8x128xf32, #tpu.memory_space<vmem>>, %arg4: memref<8x128xf32, #tpu.memory_space<vmem>>) attributes {dimension_semantics = [#tpu.dimension_semantics<parallel>], iteration_bounds = array<i64: 1>, scalar_prefetch = 0 : i64, scratch_operands = 0 : i64, tpu.core_type = #tpu.core_type<tc>, window_params = [{transform_indices = @transform_0, window_bounds = array<i64: 8, 128>}, {transform_indices = @transform_1, window_bounds = array<i64: 8, 128>}, {transform_indices = @transform_2, window_bounds = array<i64: 8, 128>}, {transform_indices = @transform_3, window_bounds = array<i64: 8, 128>}]} {
    %c0 = arith.constant 0 : index
    %c0_0 = arith.constant 0 : index
    %0 = vector.load %arg1[%c0, %c0_0] : memref<8x128xf32, #tpu.memory_space<vmem>>, vector<8x128xf32>
    %c0_1 = arith.constant 0 : index
    %c0_2 = arith.constant 0 : index
    %1 = vector.load %arg2[%c0_1, %c0_2] : memref<8x128xbf16, #tpu.memory_space<vmem>>, vector<8x128xbf16>
    %2 = arith.extf %1 : vector<8x128xbf16> to vector<8x128xf32>
    %c0_3 = arith.constant 0 : index
    %c0_4 = arith.constant 0 : index
    %3 = vector.load %arg3[%c0_3, %c0_4] : memref<8x128xf32, #tpu.memory_space<vmem>>, vector<8x128xf32>
    %4 = arith.subf %0, %2 : vector<8x128xf32>
    %5 = arith.mulf %4, %4 : vector<8x128xf32>
    %6 = arith.mulf %5, %3 : vector<8x128xf32>
    %7 = vector.shape_cast %6 : vector<8x128xf32> to vector<1x8x128xf32>
    %cst = arith.constant dense<0.000000e+00> : vector<8x128xf32>
    %8 = vector.multi_reduction <add>, %7, %cst [0] : vector<1x8x128xf32> to vector<8x128xf32>
    %c0_5 = arith.constant 0 : index
    %c0_6 = arith.constant 0 : index
    %9 = vector.load %arg4[%c0_5, %c0_6] : memref<8x128xf32, #tpu.memory_space<vmem>>, vector<8x128xf32>
    tpu.vector_store %arg4[%c0_5, %c0_6], %8 {strides = array<i32>} : memref<8x128xf32, #tpu.memory_space<vmem>>, vector<8x128xf32>,
    return
  }
  func.func @transform_0(%arg0: i32) -> (i32, i32) {
    %c0_i32 = arith.constant 0 : i32
    %c0_i32_0 = arith.constant 0 : i32
    return %arg0, %c0_i32 : i32, i32
  }
  func.func @transform_1(%arg0: i32) -> (i32, i32) {
    %c0_i32 = arith.constant 0 : i32
    %c0_i32_0 = arith.constant 0 : i32
    return %arg0, %c0_i32 : i32, i32
  }
  func.func @transform_2(%arg0: i32) -> (i32, i32) {
    %c0_i32 = arith.constant 0 : i32
    %c0_i32_0 = arith.constant 0 : i32
    return %arg0, %c0_i32 : i32, i32
  }
  func.func @transform_3(%arg0: i32) -> (i32, i32) {
    %c0_i32 = arith.constant 0 : i32
    %c0_i32_0 = arith.constant 0 : i32
    return %arg0, %c0_i32 : i32, i32
  }
}

</mosaic_0001>

<llo_original>
// kernel: ips_loss.1
$region0: #{ips_loss.1}
  #allocation0 [shape = 'u32[]', space=smem, size = 0x4, offset = 0x4, fixed_abs, tag = 'smem constant byte address 0x4 - core index']
  #allocation1 [shape = 'u32[144,128]{1,0:T(1,128)}', space=vmem, size = 0x12000, scoped, tag = 'internal scratch']
  %s0 = inlined_call_operand.vmem [shape: f32[8,128], index: 0, kind: input, shape index: {}]
  %s1 = inlined_call_operand.vmem [shape: bf16[8,128], index: 1, kind: input, shape index: {}]
  %s2 = inlined_call_operand.vmem [shape: f32[8,128], index: 2, kind: input, shape index: {}]
  %s3 = inlined_call_operand.vmem [shape: f32[8,128], index: 3, kind: output, shape index: {}]
  %s4 = sld [smem:[#allocation0]]
  $region22: #{ips_loss.1} parent=0
    _
  %s6 = ssub.s32 1, %s4
  %s7 = scalar_select 0, %s6, %s4
  // Predicated region
  $region2: #{ips_loss.1} parent=0 // pred_check
    _
  $region3: #{ips_loss.1} parent=0 // pred_check_branch
    %9 = sbr.rel (0) target = $region5
  $region4: #{ips_loss.1} parent=0 // pred_region
    _
  $region5: #{ips_loss.1} parent=0 // pred_fallthru
    _
  // Predicated region
  $region6: #{ips_loss.1} parent=0 // pred_check
    _
  $region7: #{ips_loss.1} parent=0 // pred_check_branch
    %11 = sbr.rel (0) target = $region9
  $region8: #{ips_loss.1} parent=0 // pred_region
    _
  $region9: #{ips_loss.1} parent=0 // pred_fallthru
    _
  // Predicated region
  $region10: #{ips_loss.1} parent=0 // pred_check
    _
  $region11: #{ips_loss.1} parent=0 // pred_check_branch
    %13 = sbr.rel (0) target = $region13
  $region12: #{ips_loss.1} parent=0 // pred_region
    _
  $region13: #{ips_loss.1} parent=0 // pred_fallthru
    _
  %v14 = vld [vmem:[%s0] sm:$0xff]
  %v15 = vld [vmem:[%s1] sm:$0xf]
  %v16 = vunpack.c.l.bf16 %v15
  %v17 = vld [vmem:[%s2] sm:$0xff]
  %v18 = vsub.f32 %v14, %v16
  %v19 = vmul.f32 %v18, %v18
  %v20 = vmul.f32 %v19, %v17
  %v21 = vadd.f32 %v20, 0.0
  %22 = vst [vmem:[%s3] sm:$0xff] %v21
  // Predicated region
  $region14: #{ips_loss.1} parent=0 // pred_check
    _
  $region15: #{ips_loss.1} parent=0 // pred_check_branch
    %24 = sbr.rel (0) target = $region17
  $region16: #{ips_loss.1} parent=0 // pred_region
    _
  $region17: #{ips_loss.1} parent=0 // pred_fallthru
    _
  // Predicated region
  $region18: #{ips_loss.1} parent=0 // pred_check
    _
  $region19: #{ips_loss.1} parent=0 // pred_check_branch
    %26 = sbr.rel (0) target = $region21
  $region20: #{ips_loss.1} parent=0 // pred_region
    _
  $region21: #{ips_loss.1} parent=0 // pred_fallthru
    _

</llo_original>
